<compile_context>
chip_gen: v7x
topology: tpu7x:2x2x1
jax: 0.10.0
libtpu: 0.0.40
codegen_flags: <defaults>
</compile_context>

<pallas_src>
import functools
import math

import jax
import jax.numpy as jnp
from jax import lax
from jax.experimental import pallas as pl
from jax.experimental.pallas import tpu as pltpu


LANES = 1024   # lane-dense row width: 8 vregs wide -> unmasked vst, long DMA rows
SUBL = 8       # sublane granularity (f32)


def _round_up(v, m):
    return ((v + m - 1) // m) * m


def _max_tile_rows_for_device():
    """Rows of 1024 f32 lanes per tile (1 row = 4 KiB per array)."""
    try:
        kind = jax.devices()[0].device_kind.lower()
    except Exception:  # pragma: no cover - defensive
        kind = ""
    if any(t in kind for t in ("v7", "tpu7", "v6", "tpu6")):
        # 1024 rows -> 4 MiB/array tile; x3 arrays x2 buffers = 24 MiB < 32 MiB
        # default scoped VMEM on v6e/v7x.
        return 1024
    # v5e (16 MiB scoped default) and unknown chips: 512 rows -> 12 MiB total.
    return 512


def _pick_tile_rows(rows):
    max_tr = _max_tile_rows_for_device()
    if rows <= 2 * SUBL:
        # Tiny input: one block equal to the full array (allowed even when the
        # row count is not a multiple of 8).
        return rows
    tr = min(max_tr, _round_up(rows, SUBL))
    if tr >= rows:
        # A single-step grid would idle the second TensorCore on v7x and gives
        # the DMA pipeline nothing to overlap; split medium inputs in two.
        tr = _round_up(pl.cdiv(rows, 2), SUBL)
    return tr


# ----------------------------------------------------------------------------
# Kernel body (shape agnostic: works for the 2-D and the 1-D layout).
# ----------------------------------------------------------------------------
def _cdf_kernel(params_ref, x_ref, wcdf_ref, wpdf_ref, *, apply_scale):
    """params (SMEM f32[4]) = [1/(s*sqrt2), -m/(s*sqrt2), 2/(s*sqrt(2*pi)), act_range]."""
    inv_s_sqrt2 = params_ref[0]
    shift = params_ref[1]
    pdf_coef = params_ref[2]

    # Upcast once: keep erf/exp in f32 even for bf16 inputs (v5e has no bf16 VPU/EUP).
    x = x_ref[...].astype(jnp.float32)
    a = x * inv_s_sqrt2 + shift           # a = (x - m) / (s*sqrt(2)) = z / sqrt(2)
    wcdf = lax.erf(a)                     # == cdf*2 - 1
    if apply_scale:                       # trace-time decision (quant_src == 'a')
        wcdf = wcdf * params_ref[3]
    wpdf = jnp.exp(-(a * a)) * pdf_coef   # == 2 * pdf    (a*a = z^2/2)
    wcdf_ref[...] = wcdf.astype(wcdf_ref.dtype)
    wpdf_ref[...] = wpdf.astype(wpdf_ref.dtype)


# ----------------------------------------------------------------------------
# Launchers
# ----------------------------------------------------------------------------
def _launch_2d(xf, params, apply_scale, tile_rows):
    rows, lanes = xf.shape
    grid = (pl.cdiv(rows, tile_rows),)
    kernel = functools.partial(_cdf_kernel, apply_scale=apply_scale)
    return pl.pallas_call(
        kernel,
        out_shape=(
            jax.ShapeDtypeStruct((rows, lanes), xf.dtype),
            jax.ShapeDtypeStruct((rows, lanes), xf.dtype),
        ),
        grid=grid,
        in_specs=[
            pl.BlockSpec(memory_space=pltpu.MemorySpace.SMEM),   # params
            pl.BlockSpec((tile_rows, lanes), lambda i: (i, 0)),  # x
        ],
        out_specs=(
            pl.BlockSpec((tile_rows, lanes), lambda i: (i, 0)),
            pl.BlockSpec((tile_rows, lanes), lambda i: (i, 0)),
        ),
        compiler_params=pltpu.CompilerParams(
            dimension_semantics=("parallel",),
        ),
    )(params, xf)


def _launch_1d(flat, params, apply_scale, block):
    n = flat.shape[0]
    grid = (pl.cdiv(n, block),)
    kernel = functools.partial(_cdf_kernel, apply_scale=apply_scale)
    return pl.pallas_call(
        kernel,
        out_shape=(
            jax.ShapeDtypeStruct((n,), flat.dtype),
            jax.ShapeDtypeStruct((n,), flat.dtype),
        ),
        grid=grid,
        in_specs=[
            pl.BlockSpec(memory_space=pltpu.MemorySpace.SMEM),  # params
            pl.BlockSpec((block,), lambda i: (i,)),             # x (flat)
        ],
        out_specs=(
            pl.BlockSpec((block,), lambda i: (i,)),
            pl.BlockSpec((block,), lambda i: (i,)),
        ),
        compiler_params=pltpu.CompilerParams(
            dimension_semantics=("parallel",),
        ),
    )(params, flat)


def _cdf_pure_jax(flat, params, apply_scale, out_dtype):
    """Same math as the kernel; used only as a compatibility fallback."""
    xf = flat.astype(jnp.float32)
    a = xf * params[0] + params[1]
    wcdf = lax.erf(a)
    if apply_scale:
        wcdf = wcdf * params[3]
    wpdf = jnp.exp(-(a * a)) * params[2]
    return wcdf.astype(out_dtype), wpdf.astype(out_dtype)


# ----------------------------------------------------------------------------
# Public wrapper (mirrors cdf.forward)
# ----------------------------------------------------------------------------
def cdf_forward(x, m, s, quant_src="w", act_range=1.0):
    """Returns (weight_cdf, weight_pdf), same shape/dtype as x.

    m, s, act_range must be scalars (python or 0-d JAX); this matches the
    PyTorch module's scalar Normal(m, s) contract.  They are passed to the
    kernel as SMEM scalars, so varying them does not force a recompile.
    """
    apply_scale = (quant_src == "a")
    orig_shape = x.shape
    dtype = x.dtype
    n = x.size

    # Pre-folded scalar constants (host/scalar-side work, zero per-element cost).
    m32 = jnp.asarray(m, jnp.float32)
    s32 = jnp.asarray(s, jnp.float32)
    inv_s_sqrt2 = 1.0 / (s32 * math.sqrt(2.0))
    params = jnp.stack(
        [
            inv_s_sqrt2,                               # 1/(s*sqrt(2))
            -m32 * inv_s_sqrt2,                        # -m/(s*sqrt(2))
            2.0 / (s32 * math.sqrt(2.0 * math.pi)),    # pdf coefficient (x2)
            jnp.asarray(act_range, jnp.float32),       # cdf scale (quant_src=='a')
        ]
    ).astype(jnp.float32)

    if n == 0:
        z = jnp.zeros(orig_shape, dtype)
        return z, z

    flat = x.reshape(-1)                 # contiguous flatten: free
    rows = pl.cdiv(n, LANES)
    tile_rows = _pick_tile_rows(rows)

    if n % LANES == 0:
        # Aligned: lane-dense 2-D slab, no pad, no output slicing.
        xf = flat.reshape(rows, LANES)   # free
        wcdf, wpdf = _launch_2d(xf, params, apply_scale, tile_rows)
    else:
        # Ragged: flat 1-D layout, final partial block masked by Pallas.
        block = tile_rows * LANES
        try:
            wcdf, wpdf = _launch_1d(flat, params, apply_scale, block)
        except Exception:
            # TODO(synk): some older Pallas/Mosaic versions reject rank-1 blocked
            # refs; keep a numerically identical pure-JAX fallback for that case.
            wcdf, wpdf = _cdf_pure_jax(flat, params, apply_scale, dtype)

    return wcdf.reshape(orig_shape), wpdf.reshape(orig_shape)


class Cdf:
    """Mirror of the PyTorch `cdf` module."""

    def __init__(self, m, s, quant_src, act_range=1.0):
        # NOTE: `args.act_range` is an undefined global in the original source;
        # it is exposed here as an explicit argument.
        self.m, self.s, self.quant_src, self.act_range = m, s, quant_src, act_range

    def __call__(self, tensor):
        return cdf_forward(tensor, self.m, self.s, self.quant_src, self.act_range)


# ----------------------------------------------------------------------------
# Pure-JAX reference (written in the original PyTorch op order).
# ----------------------------------------------------------------------------
def _reference(x, m, s, quant_src="w", act_range=1.0):
    xf = x.astype(jnp.float32)
    z = (xf - m) / s
    c = 0.5 * (1.0 + lax.erf(z / math.sqrt(2.0)))
    wcdf = c * 2.0 - 1.0
    if quant_src == "a":
        wcdf = wcdf * act_range
    wpdf = jnp.exp(-0.5 * z * z) / (s * math.sqrt(2.0 * math.pi)) * 2.0
    return wcdf.astype(x.dtype), wpdf.astype(x.dtype)


if __name__ == "__main__":
    m, s = 0.0, 1.5

    # 1) Aligned activation-like tensor: 2*4*16*16 = 2048 = 2 lane-rows of 1024.
    x = jax.random.normal(jax.random.PRNGKey(0), (2, 4, 16, 16), dtype=jnp.float32)
    wcdf, wpdf = cdf_forward(x, m, s, quant_src="w")
    jax.block_until_ready((wcdf, wpdf))
    r_cdf, r_pdf = _reference(x, m, s, "w")
    assert jnp.allclose(wcdf, r_cdf, atol=1e-5, rtol=1e-5)
    assert jnp.allclose(wpdf, r_pdf, atol=1e-5, rtol=1e-5)

    # 2) quant_src == 'a' path (act_range supplied explicitly).
    mod_a = Cdf(m, s, "a", act_range=4.0)
    wcdf_a, wpdf_a = mod_a(x)
    jax.block_until_ready((wcdf_a, wpdf_a))
    r_cdf_a, r_pdf_a = _reference(x, m, s, "a", 4.0)
    assert jnp.allclose(wcdf_a, r_cdf_a, atol=1e-5, rtol=1e-5)
    assert jnp.allclose(wpdf_a, r_pdf_a, atol=1e-5, rtol=1e-5)

    # 3) Ragged size (2*4*17*17 = 2312, not a multiple of 1024): 1-D masked path.
    x_r = jax.random.normal(jax.random.PRNGKey(1), (2, 4, 17, 17), dtype=jnp.float32)
    wcdf_r, wpdf_r = cdf_forward(x_r, m, s, quant_src="w")
    jax.block_until_ready((wcdf_r, wpdf_r))
    r_cdf_r, r_pdf_r = _reference(x_r, m, s, "w")
    assert jnp.allclose(wcdf_r, r_cdf_r, atol=1e-5, rtol=1e-5)
    assert jnp.allclose(wpdf_r, r_pdf_r, atol=1e-5, rtol=1e-5)

    # 4) Larger ragged size (3*16*23*23 = 25392): multi-block 1-D grid with a
    #    masked final partial block.
    x_r2 = jax.random.normal(jax.random.PRNGKey(2), (3, 16, 23, 23), dtype=jnp.float32)
    wcdf_r2, wpdf_r2 = cdf_forward(x_r2, m, s, quant_src="w")
    jax.block_until_ready((wcdf_r2, wpdf_r2))
    r_cdf_r2, r_pdf_r2 = _reference(x_r2, m, s, "w")
    assert jnp.allclose(wcdf_r2, r_cdf_r2, atol=1e-5, rtol=1e-5)
    assert jnp.allclose(wpdf_r2, r_pdf_r2, atol=1e-5, rtol=1e-5)

    # 5) Aligned multi-block path (4*16*32*32 = 65536 -> 64 rows -> grid of 2,
    #    shardable across both v7x TensorCores).
    x_b = jax.random.normal(jax.random.PRNGKey(3), (4, 16, 32, 32), dtype=jnp.float32)
    wcdf_b, wpdf_b = cdf_forward(x_b, m, s, quant_src="w")
    jax.block_until_ready((wcdf_b, wpdf_b))
    r_cdf_b, r_pdf_b = _reference(x_b, m, s, "w")
    assert jnp.allclose(wcdf_b, r_cdf_b, atol=1e-5, rtol=1e-5)
    assert jnp.allclose(wpdf_b, r_pdf_b, atol=1e-5, rtol=1e-5)

    # 6) bf16 input (kernel upcasts to f32 internally, downcasts on store).
    x_h = jax.random.normal(jax.random.PRNGKey(4), (2, 4, 16, 16), dtype=jnp.bfloat16)
    wcdf_h, wpdf_h = cdf_forward(x_h, m, s, quant_src="w")
    jax.block_until_ready((wcdf_h, wpdf_h))
    r_cdf_h, r_pdf_h = _reference(x_h, m, s, "w")
    assert jnp.allclose(wcdf_h.astype(jnp.float32), r_cdf_h.astype(jnp.float32),
                        atol=2e-2, rtol=2e-2)
    assert jnp.allclose(wpdf_h.astype(jnp.float32), r_pdf_h.astype(jnp.float32),
                        atol=2e-2, rtol=2e-2)

    print("KERNEL_OK")
</pallas_src>

<mosaic_0001>
module attributes {stable_mosaic.version = 11 : i64} {
  func.func @_cdf_kernel(%arg0: i32, %arg1: memref<4xf32, #tpu.memory_space<smem>>, %arg2: memref<2x1024xf32, #tpu.memory_space<vmem>>, %arg3: memref<2x1024xf32, #tpu.memory_space<vmem>>, %arg4: memref<2x1024xf32, #tpu.memory_space<vmem>>) attributes {dimension_semantics = [#tpu.dimension_semantics<parallel>], iteration_bounds = array<i64: 1>, scalar_prefetch = 0 : i64, scratch_operands = 0 : i64, tpu.core_type = #tpu.core_type<tc>, window_params = [{transform_indices = @transform_0, window_bounds = array<i64: 4>}, {transform_indices = @transform_1, window_bounds = array<i64: 2, 1024>}, {transform_indices = @transform_2, window_bounds = array<i64: 2, 1024>}, {transform_indices = @transform_3, window_bounds = array<i64: 2, 1024>}]} {
    %c0 = arith.constant 0 : index
    %0 = memref.load %arg1[%c0] : memref<4xf32, #tpu.memory_space<smem>>
    %c1 = arith.constant 1 : index
    %1 = memref.load %arg1[%c1] : memref<4xf32, #tpu.memory_space<smem>>
    %c2 = arith.constant 2 : index
    %2 = memref.load %arg1[%c2] : memref<4xf32, #tpu.memory_space<smem>>
    %c0_0 = arith.constant 0 : index
    %c0_1 = arith.constant 0 : index
    %3 = vector.load %arg2[%c0_0, %c0_1] : memref<2x1024xf32, #tpu.memory_space<vmem>>, vector<2x1024xf32>
    %4 = vector.broadcast %0 : f32 to vector<2x1024xf32>
    %5 = arith.mulf %3, %4 : vector<2x1024xf32>
    %6 = vector.broadcast %1 : f32 to vector<2x1024xf32>
    %7 = arith.addf %5, %6 : vector<2x1024xf32>
    %8 = math.erf %7 : vector<2x1024xf32>
    %9 = arith.mulf %7, %7 : vector<2x1024xf32>
    %cst = arith.constant 0.000000e+00 : f32
    %10 = vector.broadcast %cst : f32 to vector<2x1024xf32>
    %11 = arith.subf %10, %9 : vector<2x1024xf32>
    %12 = math.exp %11 : vector<2x1024xf32>
    %13 = vector.broadcast %2 : f32 to vector<2x1024xf32>
    %14 = arith.mulf %12, %13 : vector<2x1024xf32>
    %c0_2 = arith.constant 0 : index
    %c0_3 = arith.constant 0 : index
    %15 = vector.load %arg3[%c0_2, %c0_3] : memref<2x1024xf32, #tpu.memory_space<vmem>>, vector<2x1024xf32>
    tpu.vector_store %arg3[%c0_2, %c0_3], %8 {strides = array<i32>} : memref<2x1024xf32, #tpu.memory_space<vmem>>, vector<2x1024xf32>,
    %c0_4 = arith.constant 0 : index
    %c0_5 = arith.constant 0 : index
    %16 = vector.load %arg4[%c0_4, %c0_5] : memref<2x1024xf32, #tpu.memory_space<vmem>>, vector<2x1024xf32>
    tpu.vector_store %arg4[%c0_4, %c0_5], %14 {strides = array<i32>} : memref<2x1024xf32, #tpu.memory_space<vmem>>, vector<2x1024xf32>,
    return
  }
  func.func @transform_0(%arg0: i32) -> i32 {
    %c0_i32 = arith.constant 0 : i32
    %c0_i32_0 = arith.constant 0 : i32
    return %c0_i32 : i32
  }
  func.func @transform_1(%arg0: i32) -> (i32, i32) {
    %c0_i32 = arith.constant 0 : i32
    %c0_i32_0 = arith.constant 0 : i32
    return %arg0, %c0_i32 : i32, i32
  }
  func.func @transform_2(%arg0: i32) -> (i32, i32) {
    %c0_i32 = arith.constant 0 : i32
    %c0_i32_0 = arith.constant 0 : i32
    return %arg0, %c0_i32 : i32, i32
  }
  func.func @transform_3(%arg0: i32) -> (i32, i32) {
    %c0_i32 = arith.constant 0 : i32
    %c0_i32_0 = arith.constant 0 : i32
    return %arg0, %c0_i32 : i32, i32
  }
}

</mosaic_0001>

<llo_original>
// kernel: tpu_custom_call.1
$region0: #{tpu_custom_call.1}
  #allocation0 [shape = 'u32[]', space=smem, size = 0x4, offset = 0x4, fixed_abs, tag = 'smem constant byte address 0x4 - core index']
  #allocation1 [shape = 'u32[144,128]{1,0:T(1,128)}', space=vmem, size = 0x12000, scoped, tag = 'internal scratch']
  %s0 = inlined_call_operand.hbm [shape: f32[4], index: 0, kind: input, shape index: {}]
  %s1 = inlined_call_operand.hbm [shape: f32[2,1024], index: 1, kind: input, shape index: {}]
  %s2 = inlined_call_operand.hbm [shape: f32[2,1024], index: 2, kind: output, shape index: {0}]
  %s3 = inlined_call_operand.hbm [shape: f32[2,1024], index: 3, kind: output, shape index: {1}]
  %4 = xla_tuple %s2, %s3
  %s5 = sld [smem:[#allocation0]]
  $region34: #{tpu_custom_call.1} parent=0
    _
  %s7 = ssub.s32 1, %s5
  %s8 = scalar_select 0, %s7, %s5
  $region1: #{tpu_custom_call.1} parent=0
    #allocation2 [shape = 'u8[512]{0}', space=smem, size = 0x200, scoped, tag = 'input window, operand 0, single buffered']
    #allocation3 [shape = 's32[1]{0}', space=sflag, size = 0x4, scoped, tag = 'scoped memory for tpu_custom_call.1']
    #allocation4 [shape = 's32[1]{0}', space=sflag, size = 0x4, scoped, tag = 'scoped memory for tpu_custom_call.1']
    #allocation5 [shape = 's32[1]{0}', space=sflag, size = 0x4, scoped, tag = 'scoped memory for tpu_custom_call.1']
    #allocation6 [shape = 'u8[8192]{0}', space=vmem, size = 0x2000, scoped, tag = 'input window, operand 1, single buffered']
    #allocation7 [shape = 'u8[8192]{0}', space=vmem, size = 0x2000, scoped, tag = 'output window, operand 0, single buffered']
    #allocation8 [shape = 'u8[8192]{0}', space=vmem, size = 0x2000, scoped, tag = 'output window, operand 1, single buffered']
    #allocation9 [shape = 's32[1]{0}', space=sflag, size = 0x4, scoped, tag = 'scoped memory for tpu_custom_call.1']
    %9 = vsyncpa [#allocation5], 0
    %10 = vsyncpa [#allocation3], 0
    %11 = vsyncpa [#allocation4], 0
    %12 = vsyncpa [#allocation9], 0
    // Predicated region
    $region2: #{tpu_custom_call.1} parent=1 // pred_check
      _
    $region3: #{tpu_custom_call.1} parent=1 // pred_check_branch
      %14 = sbr.rel (0) target = $region5
    $region4: #{tpu_custom_call.1} parent=1 // pred_region
      %s16 = ssub.s32 16, 16
      %17 = vsyncadd [#allocation5], %s16
      %20 = dma.hbm_to_smem %s0, 16, [#allocation2], [#allocation5]
    $region5: #{tpu_custom_call.1} parent=1 // pred_fallthru
      _
    // Predicated region
    $region6: #{tpu_custom_call.1} parent=1 // pred_check
      _
    $region7: #{tpu_custom_call.1} parent=1 // pred_check_branch
      %22 = sbr.rel (0) target = $region9
    $region8: #{tpu_custom_call.1} parent=1 // pred_region
      %s24 = ssub.s32 256, 256
      %25 = vsyncadd [#allocation3], %s24
      %s27 = sshll.u32 [#allocation6], 4
      %s28 = int_to_ptr.vmem [resolvable:$true] %s27
      %30 = dma.hbm_to_vmem [thread:$0]  %s1, 256, %s28, [#allocation3]
    $region9: #{tpu_custom_call.1} parent=1 // pred_fallthru
      _
    // Predicated region
    $region10: #{tpu_custom_call.1} parent=1 // pred_check
      _
    $region11: #{tpu_custom_call.1} parent=1 // pred_check_branch
      %32 = sbr.rel (0) target = $region13
    $region12: #{tpu_custom_call.1} parent=1 // pred_region
      %33 = dma.done [#allocation5], 16
    $region13: #{tpu_custom_call.1} parent=1 // pred_fallthru
      _
    // Predicated region
    $region14: #{tpu_custom_call.1} parent=1 // pred_check
      _
    $region15: #{tpu_custom_call.1} parent=1 // pred_check_branch
      %35 = sbr.rel (0) target = $region17
    $region16: #{tpu_custom_call.1} parent=1 // pred_region
      %36 = dma.done [#allocation3], 256
    $region17: #{tpu_custom_call.1} parent=1 // pred_fallthru
      _
    %37 = sfence
    %s38 = sld [smem:[#allocation2]]
    %s39 = sld [smem:[#allocation2 + $0x1]]
    %s40 = sld [smem:[#allocation2 + $0x2]]
    %v41 = vld [vmem:[#allocation6] sm:$0xff]
    %v42 = vld [vmem:[#allocation6 + $0x8] sm:$0xff]
    %v43 = vstv %s38
    %v44 = vmul.f32 %v41, %v43
    %v45 = vmul.f32 %v42, %v43
    %v46 = vstv %s39
    %v47 = vadd.f32 %v44, %v46
    %v48 = vadd.f32 %v45, %v46
    %v49 = verf.f32.pop %v47
    %v50 = verf.f32.pop %v48
    %v51 = vmul.f32 %v47, %v47
    %v52 = vmul.f32 %v48, %v48
    %v53 = vsub.f32 0.0, %v51
    %v54 = vsub.f32 0.0, %v52
    %v55 = vmul.f32 %v53, 1.442695
    %v56 = vpow.pop %v55
    %v57 = vmul.f32 %v54, 1.442695
    %v58 = vpow.pop %v57
    %v59 = vstv %s40
    %v60 = vmul.f32 %v56, %v59
    %v61 = vmul.f32 %v58, %v59
    %62 = vst [vmem:[#allocation7] sm:$0xff] %v49
    %63 = vst [vmem:[#allocation7 + $0x8] sm:$0xff] %v50
    %64 = vst [vmem:[#allocation8] sm:$0xff] %v60
    %65 = vst [vmem:[#allocation8 + $0x8] sm:$0xff] %v61
    // Predicated region
    $region18: #{tpu_custom_call.1} parent=1 // pred_check
      _
    $region19: #{tpu_custom_call.1} parent=1 // pred_check_branch
      %67 = sbr.rel (0) target = $region21
    $region20: #{tpu_custom_call.1} parent=1 // pred_region
      %s69 = ssub.s32 256, 256
      %70 = vsyncadd [#allocation4], %s69
      %s72 = sshll.u32 [#allocation7], 4
      %s73 = int_to_ptr.vmem [resolvable:$true] %s72
      %75 = dma.vmem_to_hbm [thread:$0]  %s73, 256, %s2, [#allocation4]
    $region21: #{tpu_custom_call.1} parent=1 // pred_fallthru
      _
    // Predicated region
    $region22: #{tpu_custom_call.1} parent=1 // pred_check
      _
    $region23: #{tpu_custom_call.1} parent=1 // pred_check_branch
      %77 = sbr.rel (0) target = $region25
    $region24: #{tpu_custom_call.1} parent=1 // pred_region
      %s79 = ssub.s32 256, 256
      %80 = vsyncadd [#allocation9], %s79
      %s82 = sshll.u32 [#allocation8], 4
      %s83 = int_to_ptr.vmem [resolvable:$true] %s82
      %85 = dma.vmem_to_hbm [thread:$0]  %s83, 256, %s3, [#allocation9]
    $region25: #{tpu_custom_call.1} parent=1 // pred_fallthru
      _
    // Predicated region
    $region26: #{tpu_custom_call.1} parent=1 // pred_check
      _
    $region27: #{tpu_custom_call.1} parent=1 // pred_check_branch
      %87 = sbr.rel (0) target = $region29
    $region28: #{tpu_custom_call.1} parent=1 // pred_region
      %88 = dma.done [#allocation4], 256
    $region29: #{tpu_custom_call.1} parent=1 // pred_fallthru
      _
    // Predicated region
    $region30: #{tpu_custom_call.1} parent=1 // pred_check
      _
    $region31: #{tpu_custom_call.1} parent=1 // pred_check_branch
      %90 = sbr.rel (0) target = $region33
    $region32: #{tpu_custom_call.1} parent=1 // pred_region
      %91 = dma.done [#allocation9], 256
    $region33: #{tpu_custom_call.1} parent=1 // pred_fallthru
      _
    %92 = vsyncpa [#allocation3], 1
    %93 = vsyncpa [#allocation4], 1
    %94 = vsyncpa [#allocation9], 1
    %95 = vsyncpa [#allocation5], 1

</llo_original>
